<compile_context>
chip_gen: v7x
topology: tpu7x:2x2x1
jax: 0.10.0
libtpu: 0.0.40
codegen_flags: <defaults>
</compile_context>

<pallas_src>
import math

import jax
import jax.numpy as jnp
from jax.experimental import pallas as pl
from jax.experimental.pallas import tpu as pltpu

HIDDEN1 = 128
HIDDEN2 = 64
LANE = 128        # lane width; batch tiles are multiples of this
MAX_TB = 1024     # max batch-tile size (per-step-overhead amortization)


def _round_up(n, m):
    return ((n + m - 1) // m) * m


def munet_ann_kernel(x_ref, w1_ref, b1_ref, w2_ref, b2_ref, w3_ref, b3_ref,
                     out_ref):
    # Batch-on-lanes: x_ref is (S, TB) bf16, weights are (fan_out, fan_in)
    # bf16, biases are (fan_out, 1) f32.  MXU matmuls accumulate in f32;
    # bias-add / ReLU / tanh run in f32 on the VPU/EUP.
    x = x_ref[...]                                                   # (S, TB) bf16

    # fc1 + relu : (128, S) @ (S, TB) -> (128, TB)
    h1 = jnp.dot(w1_ref[...], x, preferred_element_type=jnp.float32)
    h1 = jnp.maximum(h1 + b1_ref[...], 0.0)

    # fc2 + relu : (64, 128) @ (128, TB) -> (64, TB)
    h2 = jnp.dot(w2_ref[...], h1.astype(jnp.bfloat16),
                 preferred_element_type=jnp.float32)
    h2 = jnp.maximum(h2 + b2_ref[...], 0.0)

    # fc_mu + tanh : (A, 64) @ (64, TB) -> (A, TB)
    mu = jnp.dot(w3_ref[...], h2.astype(jnp.bfloat16),
                 preferred_element_type=jnp.float32)
    out_ref[...] = jnp.tanh(mu + b3_ref[...])


def init_params(key, state_space, action_space):
    """Init matching torch.nn.Linear defaults: U(-1/sqrt(fan_in), 1/sqrt(fan_in)).

    Weights are stored (fan_out, fan_in) in bf16 (MXU operand dtype); biases
    are stored (fan_out, 1) in f32 so the elementwise path stays f32.
    """
    ks = jax.random.split(key, 6)

    def linear(kw, kb, fan_in, fan_out):
        bound = 1.0 / math.sqrt(fan_in)
        w = jax.random.uniform(kw, (fan_out, fan_in), jnp.float32, -bound, bound)
        b = jax.random.uniform(kb, (fan_out,), jnp.float32, -bound, bound)
        return w.astype(jnp.bfloat16), b.reshape(fan_out, 1)

    w1, b1 = linear(ks[0], ks[1], state_space, HIDDEN1)
    w2, b2 = linear(ks[2], ks[3], HIDDEN1, HIDDEN2)
    w3, b3 = linear(ks[4], ks[5], HIDDEN2, action_space)
    return (w1, b1, w2, b2, w3, b3)


def munet_ann_forward(x, params):
    """x: (B, state_space) f32  ->  (B, action_space) f32."""
    w1, b1, w2, b2, w3, b3 = params
    B, S = x.shape
    A = w3.shape[0]

    # Batch tile: multiple of the 128-lane width, up to MAX_TB rows per step.
    tb = min(MAX_TB, _round_up(B, LANE))
    b_pad = _round_up(B, tb)

    # Transpose to batch-on-lanes and cast to bf16 once; pad batch to tile.
    x_t = jnp.pad(x.T.astype(jnp.bfloat16), ((0, 0), (0, b_pad - B)))

    full = lambda i: (0, 0)   # weights/biases: resident, fetched once
    out_t = pl.pallas_call(
        munet_ann_kernel,
        out_shape=jax.ShapeDtypeStruct((A, b_pad), jnp.float32),
        grid=(pl.cdiv(b_pad, tb),),
        in_specs=[
            pl.BlockSpec((S, tb), lambda i: (0, i)),      # x tile (S, TB)
            pl.BlockSpec(w1.shape, full),
            pl.BlockSpec(b1.shape, full),
            pl.BlockSpec(w2.shape, full),
            pl.BlockSpec(b2.shape, full),
            pl.BlockSpec(w3.shape, full),
            pl.BlockSpec(b3.shape, full),
        ],
        out_specs=pl.BlockSpec((A, tb), lambda i: (0, i)),
        compiler_params=pltpu.CompilerParams(
            dimension_semantics=("parallel",)),
    )(x_t, w1, b1, w2, b2, w3, b3)

    return out_t[:, :B].T


def munet_ann_reference(x, params):
    """Pure-JAX f32 reference (weights dequantized to f32)."""
    w1, b1, w2, b2, w3, b3 = params
    w1, w2, w3 = (w.astype(jnp.float32) for w in (w1, w2, w3))
    h1 = jnp.maximum(x @ w1.T + b1.T, 0.0)
    h2 = jnp.maximum(h1 @ w2.T + b2.T, 0.0)
    return jnp.tanh(h2 @ w3.T + b3.T)


if __name__ == "__main__":
    state_space = 4
    action_space = 2

    key = jax.random.PRNGKey(0)
    kx, kp, kx2 = jax.random.split(key, 3)
    params = init_params(kp, state_space, action_space)
    fwd = jax.jit(munet_ann_forward)

    # Small shipped shape (B=2): single grid step, launch bound.
    x = jax.random.normal(kx, (2, state_space), jnp.float32)
    out = fwd(x, params)
    jax.block_until_ready(out)
    ref = munet_ann_reference(x, params)
    assert out.shape == (2, action_space)
    assert bool(jnp.all(jnp.isfinite(out)))
    assert bool(jnp.all(jnp.abs(out) <= 1.0))                     # tanh range
    # bf16-at-the-MXU: tolerance relaxed vs the f32 reference.
    assert bool(jnp.allclose(out, ref, atol=2e-2, rtol=2e-2))

    # Batched / non-multiple batch: exercises the multi-step grid + padding.
    x2 = jax.random.normal(kx2, (300, state_space), jnp.float32)
    out2 = fwd(x2, params)
    jax.block_until_ready(out2)
    ref2 = munet_ann_reference(x2, params)
    assert out2.shape == (300, action_space)
    assert bool(jnp.allclose(out2, ref2, atol=2e-2, rtol=2e-2))

    print("KERNEL_OK")
</pallas_src>

<mosaic_0001>
module attributes {stable_mosaic.version = 11 : i64} {
  func.func @munet_ann_kernel(%arg0: i32, %arg1: memref<4x128xbf16, #tpu.memory_space<vmem>>, %arg2: memref<128x4xbf16, #tpu.memory_space<vmem>>, %arg3: memref<128x1xf32, #tpu.memory_space<vmem>>, %arg4: memref<64x128xbf16, #tpu.memory_space<vmem>>, %arg5: memref<64x1xf32, #tpu.memory_space<vmem>>, %arg6: memref<2x64xbf16, #tpu.memory_space<vmem>>, %arg7: memref<2x1xf32, #tpu.memory_space<vmem>>, %arg8: memref<2x128xf32, #tpu.memory_space<vmem>>) attributes {dimension_semantics = [#tpu.dimension_semantics<parallel>], iteration_bounds = array<i64: 1>, scalar_prefetch = 0 : i64, scratch_operands = 0 : i64, tpu.core_type = #tpu.core_type<tc>, window_params = [{transform_indices = @transform_0, window_bounds = array<i64: 4, 128>}, {pipeline_mode = #tpu.pipeline_mode<synchronous>, transform_indices = @transform_1, window_bounds = array<i64: 128, 4>}, {pipeline_mode = #tpu.pipeline_mode<synchronous>, transform_indices = @transform_2, window_bounds = array<i64: 128, 1>}, {pipeline_mode = #tpu.pipeline_mode<synchronous>, transform_indices = @transform_3, window_bounds = array<i64: 64, 128>}, {pipeline_mode = #tpu.pipeline_mode<synchronous>, transform_indices = @transform_4, window_bounds = array<i64: 64, 1>}, {pipeline_mode = #tpu.pipeline_mode<synchronous>, transform_indices = @transform_5, window_bounds = array<i64: 2, 64>}, {pipeline_mode = #tpu.pipeline_mode<synchronous>, transform_indices = @transform_6, window_bounds = array<i64: 2, 1>}, {transform_indices = @transform_7, window_bounds = array<i64: 2, 128>}]} {
    %c0 = arith.constant 0 : index
    %c0_0 = arith.constant 0 : index
    %0 = vector.load %arg1[%c0, %c0_0] : memref<4x128xbf16, #tpu.memory_space<vmem>>, vector<4x128xbf16>
    %c0_1 = arith.constant 0 : index
    %c0_2 = arith.constant 0 : index
    %1 = vector.load %arg2[%c0_1, %c0_2] : memref<128x4xbf16, #tpu.memory_space<vmem>>, vector<128x4xbf16>
    %cst = arith.constant dense<0.000000e+00> : vector<128x128xf32>
    %2 = tpu.matmul %1, %0, %cst {dimension_numbers = #tpu.dot_dimension_numbers<[1], [0], [0], [1], [0, 0, 1, 1], [], []>} : vector<128x4xbf16>, vector<4x128xbf16>, vector<128x128xf32> -> vector<128x128xf32>
    %c0_3 = arith.constant 0 : index
    %c0_4 = arith.constant 0 : index
    %3 = vector.load %arg3[%c0_3, %c0_4] : memref<128x1xf32, #tpu.memory_space<vmem>>, vector<128x1xf32>
    %4 = vector.broadcast %3 : vector<128x1xf32> to vector<128x128xf32>
    %5 = arith.addf %2, %4 : vector<128x128xf32>
    %cst_5 = arith.constant 0.000000e+00 : f32
    %6 = vector.broadcast %cst_5 : f32 to vector<128x128xf32>
    %7 = arith.maximumf %5, %6 : vector<128x128xf32>
    %c0_6 = arith.constant 0 : index
    %c0_7 = arith.constant 0 : index
    %8 = vector.load %arg4[%c0_6, %c0_7] : memref<64x128xbf16, #tpu.memory_space<vmem>>, vector<64x128xbf16>
    %9 = arith.truncf %7 : vector<128x128xf32> to vector<128x128xbf16>
    %cst_8 = arith.constant dense<0.000000e+00> : vector<64x128xf32>
    %10 = tpu.matmul %8, %9, %cst_8 {dimension_numbers = #tpu.dot_dimension_numbers<[1], [0], [0], [1], [0, 0, 1, 1], [], []>} : vector<64x128xbf16>, vector<128x128xbf16>, vector<64x128xf32> -> vector<64x128xf32>
    %c0_9 = arith.constant 0 : index
    %c0_10 = arith.constant 0 : index
    %11 = vector.load %arg5[%c0_9, %c0_10] : memref<64x1xf32, #tpu.memory_space<vmem>>, vector<64x1xf32>
    %12 = vector.broadcast %11 : vector<64x1xf32> to vector<64x128xf32>
    %13 = arith.addf %10, %12 : vector<64x128xf32>
    %cst_11 = arith.constant 0.000000e+00 : f32
    %14 = vector.broadcast %cst_11 : f32 to vector<64x128xf32>
    %15 = arith.maximumf %13, %14 : vector<64x128xf32>
    %c0_12 = arith.constant 0 : index
    %c0_13 = arith.constant 0 : index
    %16 = vector.load %arg6[%c0_12, %c0_13] : memref<2x64xbf16, #tpu.memory_space<vmem>>, vector<2x64xbf16>
    %17 = arith.truncf %15 : vector<64x128xf32> to vector<64x128xbf16>
    %cst_14 = arith.constant dense<0.000000e+00> : vector<2x128xf32>
    %18 = tpu.matmul %16, %17, %cst_14 {dimension_numbers = #tpu.dot_dimension_numbers<[1], [0], [0], [1], [0, 0, 1, 1], [], []>} : vector<2x64xbf16>, vector<64x128xbf16>, vector<2x128xf32> -> vector<2x128xf32>
    %c0_15 = arith.constant 0 : index
    %c0_16 = arith.constant 0 : index
    %19 = vector.load %arg7[%c0_15, %c0_16] : memref<2x1xf32, #tpu.memory_space<vmem>>, vector<2x1xf32>
    %20 = vector.broadcast %19 : vector<2x1xf32> to vector<2x128xf32>
    %21 = arith.addf %18, %20 : vector<2x128xf32>
    %22 = math.tanh %21 : vector<2x128xf32>
    %c0_17 = arith.constant 0 : index
    %c0_18 = arith.constant 0 : index
    %23 = vector.load %arg8[%c0_17, %c0_18] : memref<2x128xf32, #tpu.memory_space<vmem>>, vector<2x128xf32>
    tpu.vector_store %arg8[%c0_17, %c0_18], %22 {strides = array<i32>} : memref<2x128xf32, #tpu.memory_space<vmem>>, vector<2x128xf32>,
    return
  }
  func.func @transform_0(%arg0: i32) -> (i32, i32) {
    %c0_i32 = arith.constant 0 : i32
    %c0_i32_0 = arith.constant 0 : i32
    return %c0_i32, %arg0 : i32, i32
  }
  func.func @transform_1(%arg0: i32) -> (i32, i32) {
    %c0_i32 = arith.constant 0 : i32
    %c0_i32_0 = arith.constant 0 : i32
    %c0_i32_1 = arith.constant 0 : i32
    return %c0_i32, %c0_i32_0 : i32, i32
  }
  func.func @transform_2(%arg0: i32) -> (i32, i32) {
    %c0_i32 = arith.constant 0 : i32
    %c0_i32_0 = arith.constant 0 : i32
    %c0_i32_1 = arith.constant 0 : i32
    return %c0_i32, %c0_i32_0 : i32, i32
  }
  func.func @transform_3(%arg0: i32) -> (i32, i32) {
    %c0_i32 = arith.constant 0 : i32
    %c0_i32_0 = arith.constant 0 : i32
    %c0_i32_1 = arith.constant 0 : i32
    return %c0_i32, %c0_i32_0 : i32, i32
  }
  func.func @transform_4(%arg0: i32) -> (i32, i32) {
    %c0_i32 = arith.constant 0 : i32
    %c0_i32_0 = arith.constant 0 : i32
    %c0_i32_1 = arith.constant 0 : i32
    return %c0_i32, %c0_i32_0 : i32, i32
  }
  func.func @transform_5(%arg0: i32) -> (i32, i32) {
    %c0_i32 = arith.constant 0 : i32
    %c0_i32_0 = arith.constant 0 : i32
    %c0_i32_1 = arith.constant 0 : i32
    return %c0_i32, %c0_i32_0 : i32, i32
  }
  func.func @transform_6(%arg0: i32) -> (i32, i32) {
    %c0_i32 = arith.constant 0 : i32
    %c0_i32_0 = arith.constant 0 : i32
    %c0_i32_1 = arith.constant 0 : i32
    return %c0_i32, %c0_i32_0 : i32, i32
  }
  func.func @transform_7(%arg0: i32) -> (i32, i32) {
    %c0_i32 = arith.constant 0 : i32
    %c0_i32_0 = arith.constant 0 : i32
    return %c0_i32, %arg0 : i32, i32
  }
}

</mosaic_0001>

<llo_original>
// kernel: munet_ann_forward.1
$region0: #{munet_ann_forward.1}
  #allocation0 [shape = 'u32[]', space=smem, size = 0x4, offset = 0x4, fixed_abs, tag = 'smem constant byte address 0x4 - core index']
  #allocation1 [shape = 'u32[144,128]{1,0:T(1,128)}', space=vmem, size = 0x12000, scoped, tag = 'internal scratch']
  %s0 = inlined_call_operand.vmem [shape: bf16[4,128], index: 0, kind: input, shape index: {}]
  %s1 = inlined_call_operand.vmem [shape: bf16[128,4], index: 1, kind: input, shape index: {}]
  %s2 = inlined_call_operand.vmem [shape: f32[128,1], index: 2, kind: input, shape index: {}]
  %s3 = inlined_call_operand.vmem [shape: bf16[64,128], index: 3, kind: input, shape index: {}]
  %s4 = inlined_call_operand.vmem [shape: f32[64,1], index: 4, kind: input, shape index: {}]
  %s5 = inlined_call_operand.vmem [shape: bf16[2,64], index: 5, kind: input, shape index: {}]
  %s6 = inlined_call_operand.vmem [shape: f32[2,1], index: 6, kind: input, shape index: {}]
  %s7 = inlined_call_operand.vmem [shape: f32[2,128], index: 7, kind: output, shape index: {}]
  %s8 = sld [smem:[#allocation0]]
  $region38: #{munet_ann_forward.1} parent=0
    _
  %s10 = ssub.s32 1, %s8
  %s11 = scalar_select 0, %s10, %s8
  // Predicated region
  $region2: #{munet_ann_forward.1} parent=0 // pred_check
    _
  $region3: #{munet_ann_forward.1} parent=0 // pred_check_branch
    %13 = sbr.rel (0) target = $region5
  $region4: #{munet_ann_forward.1} parent=0 // pred_region
    _
  $region5: #{munet_ann_forward.1} parent=0 // pred_fallthru
    _
  // Predicated region
  $region6: #{munet_ann_forward.1} parent=0 // pred_check
    _
  $region7: #{munet_ann_forward.1} parent=0 // pred_check_branch
    %15 = sbr.rel (0) target = $region9
  $region8: #{munet_ann_forward.1} parent=0 // pred_region
    _
  $region9: #{munet_ann_forward.1} parent=0 // pred_fallthru
    _
  // Predicated region
  $region10: #{munet_ann_forward.1} parent=0 // pred_check
    _
  $region11: #{munet_ann_forward.1} parent=0 // pred_check_branch
    %17 = sbr.rel (0) target = $region13
  $region12: #{munet_ann_forward.1} parent=0 // pred_region
    _
  $region13: #{munet_ann_forward.1} parent=0 // pred_fallthru
    _
  // Predicated region
  $region14: #{munet_ann_forward.1} parent=0 // pred_check
    _
  $region15: #{munet_ann_forward.1} parent=0 // pred_check_branch
    %19 = sbr.rel (0) target = $region17
  $region16: #{munet_ann_forward.1} parent=0 // pred_region
    _
  $region17: #{munet_ann_forward.1} parent=0 // pred_fallthru
    _
  // Predicated region
  $region18: #{munet_ann_forward.1} parent=0 // pred_check
    _
  $region19: #{munet_ann_forward.1} parent=0 // pred_check_branch
    %21 = sbr.rel (0) target = $region21
  $region20: #{munet_ann_forward.1} parent=0 // pred_region
    _
  $region21: #{munet_ann_forward.1} parent=0 // pred_fallthru
    _
  // Predicated region
  $region22: #{munet_ann_forward.1} parent=0 // pred_check
    _
  $region23: #{munet_ann_forward.1} parent=0 // pred_check_branch
    %23 = sbr.rel (0) target = $region25
  $region24: #{munet_ann_forward.1} parent=0 // pred_region
    _
  $region25: #{munet_ann_forward.1} parent=0 // pred_fallthru
    _
  // Predicated region
  $region26: #{munet_ann_forward.1} parent=0 // pred_check
    _
  $region27: #{munet_ann_forward.1} parent=0 // pred_check_branch
    %25 = sbr.rel (0) target = $region29
  $region28: #{munet_ann_forward.1} parent=0 // pred_region
    _
  $region29: #{munet_ann_forward.1} parent=0 // pred_fallthru
    _
  %v27 = vld [vmem:[%s0] sm:$0x3]
  %v28 = vld [vmem:[%s1] sm:$0xf]
  %v29 = vld [vmem:[%s1 + $0x4] sm:$0xf]
  %v30 = vld [vmem:[%s1 + $0x8] sm:$0xf]
  %v31 = vld [vmem:[%s1 + $0xc] sm:$0xf]
  %v32 = vld [vmem:[%s1 + $0x10] sm:$0xf]
  %v33 = vld [vmem:[%s1 + $0x14] sm:$0xf]
  %v34 = vld [vmem:[%s1 + $0x18] sm:$0xf]
  %v35 = vld [vmem:[%s1 + $0x1c] sm:$0xf]
  %v36 = vld [vmem:[%s1 + $0x20] sm:$0xf]
  %v37 = vld [vmem:[%s1 + $0x24] sm:$0xf]
  %v38 = vld [vmem:[%s1 + $0x28] sm:$0xf]
  %v39 = vld [vmem:[%s1 + $0x2c] sm:$0xf]
  %v40 = vld [vmem:[%s1 + $0x30] sm:$0xf]
  %v41 = vld [vmem:[%s1 + $0x34] sm:$0xf]
  %v42 = vld [vmem:[%s1 + $0x38] sm:$0xf]
  %v43 = vld [vmem:[%s1 + $0x3c] sm:$0xf]
  %v44 = vld [vmem:[%s2] sm:$0xff]
  %v45 = vld [vmem:[%s2 + $0x8] sm:$0xff]
  %v46 = vld [vmem:[%s2 + $0x10] sm:$0xff]
  %v47 = vld [vmem:[%s2 + $0x18] sm:$0xff]
  %v48 = vld [vmem:[%s2 + $0x20] sm:$0xff]
  %v49 = vld [vmem:[%s2 + $0x28] sm:$0xff]
  %v50 = vld [vmem:[%s2 + $0x30] sm:$0xff]
  %v51 = vld [vmem:[%s2 + $0x38] sm:$0xff]
  %v52 = vld [vmem:[%s2 + $0x40] sm:$0xff]
  %v53 = vld [vmem:[%s2 + $0x48] sm:$0xff]
  %v54 = vld [vmem:[%s2 + $0x50] sm:$0xff]
  %v55 = vld [vmem:[%s2 + $0x58] sm:$0xff]
  %v56 = vld [vmem:[%s2 + $0x60] sm:$0xff]
  %v57 = vld [vmem:[%s2 + $0x68] sm:$0xff]
  %v58 = vld [vmem:[%s2 + $0x70] sm:$0xff]
  %v59 = vld [vmem:[%s2 + $0x78] sm:$0xff]
  %61 = vset.pattern.permute.xlu0 0
  %62 = vperm.xlu0 %61, %v44
  %v63 = vpop.permute.xlu0 %62
  %66 = vset.pattern.permute.xlu0 0
  %67 = vperm.xlu0 %66, %v45
  %v68 = vpop.permute.xlu0 %67
  %71 = vset.pattern.permute.xlu0 0
  %72 = vperm.xlu0 %71, %v46
  %v73 = vpop.permute.xlu0 %72
  %76 = vset.pattern.permute.xlu0 0
  %77 = vperm.xlu0 %76, %v47
  %v78 = vpop.permute.xlu0 %77
  %81 = vset.pattern.permute.xlu0 0
  %82 = vperm.xlu0 %81, %v48
  %v83 = vpop.permute.xlu0 %82
  %86 = vset.pattern.permute.xlu0 0
  %87 = vperm.xlu0 %86, %v49
  %v88 = vpop.permute.xlu0 %87
  %91 = vset.pattern.permute.xlu0 0
  %92 = vperm.xlu0 %91, %v50
  %v93 = vpop.permute.xlu0 %92
  %96 = vset.pattern.permute.xlu0 0
  %97 = vperm.xlu0 %96, %v51
  %v98 = vpop.permute.xlu0 %97
  %101 = vset.pattern.permute.xlu0 0
  %102 = vperm.xlu0 %101, %v52
  %v103 = vpop.permute.xlu0 %102
  %106 = vset.pattern.permute.xlu0 0
  %107 = vperm.xlu0 %106, %v53
  %v108 = vpop.permute.xlu0 %107
  %111 = vset.pattern.permute.xlu0 0
  %112 = vperm.xlu0 %111, %v54
  %v113 = vpop.permute.xlu0 %112
  %116 = vset.pattern.permute.xlu0 0
  %117 = vperm.xlu0 %116, %v55
  %v118 = vpop.permute.xlu0 %117
  %121 = vset.pattern.permute.xlu0 0
  %122 = vperm.xlu0 %121, %v56
  %v123 = vpop.permute.xlu0 %122
  %126 = vset.pattern.permute.xlu0 0
  %127 = vperm.xlu0 %126, %v57
  %v128 = vpop.permute.xlu0 %127
  %131 = vset.pattern.permute.xlu0 0
  %132 = vperm.xlu0 %131, %v58
  %v133 = vpop.permute.xlu0 %132
  %136 = vset.pattern.permute.xlu0 0
  %137 = vperm.xlu0 %136, %v59
  %v138 = vpop.permute.xlu0 %137
  %v156 = vunpack.c.l.b16 %v28
  %v157 = vunpack.c.l.b16 %v29
  %v158 = vunpack.c.l.b16 %v30
  %v159 = vunpack.c.l.b16 %v31
  %v160 = vunpack.c.l.b16 %v32
  %v161 = vunpack.c.l.b16 %v33
  %v162 = vunpack.c.l.b16 %v34
  %v163 = vunpack.c.l.b16 %v35
  %v164 = vunpack.c.l.b16 %v36
  %v165 = vunpack.c.l.b16 %v37
  %v166 = vunpack.c.l.b16 %v38
  %v167 = vunpack.c.l.b16 %v39
  %v168 = vunpack.c.l.b16 %v40
  %v169 = vunpack.c.l.b16 %v41
  %v170 = vunpack.c.l.b16 %v42
  %v171 = vunpack.c.l.b16 %v43
  %v172 = vpack.c.b16 %v157, %v156
  %v173 = vpack.c.b16 %v159, %v158
  %v174 = vpack.c.b16 %v161, %v160
  %v175 = vpack.c.b16 %v163, %v162
  %v176 = vpack.c.b16 %v165, %v164
  %v177 = vpack.c.b16 %v167, %v166
  %v178 = vpack.c.b16 %v169, %v168
  %v179 = vpack.c.b16 %v171, %v170
  %vm180 = vcmask 31744
  %v182 = vsel %vm180, %v172, 0
  %v185 = vsel %vm180, %v173, 0
  %v188 = vsel %vm180, %v174, 0
  %v191 = vsel %vm180, %v175, 0
  %v194 = vsel %vm180, %v176, 0
  %v197 = vsel %vm180, %v177, 0
  %v200 = vsel %vm180, %v178, 0
  %v203 = vsel %vm180, %v179, 0
  %vm205 = vcmask 1041408
  %v207 = vsel %vm205, %v27, 0
  %209 = vmatprep.subr.bf16.mxu0 0
  %210 = vmatpush1.bf16.msra.mxu0 %v207
  %211 = vmatprep.subr.bf16.mxu0 0
  %212 = vmatpush1.bf16.msra.mxu0 0
  %213 = vmatprep.subr.bf16.mxu0 0
  %214 = vmatpush1.bf16.msra.mxu0 0
  %215 = vmatprep.subr.bf16.mxu0 0
  %216 = vmatpush1.bf16.msra.mxu0 0
  %217 = vmatprep.subr.bf16.mxu0 0
  %218 = vmatpush1.bf16.msra.mxu0 0
  %219 = vmatprep.subr.bf16.mxu0 0
  %220 = vmatpush1.bf16.msra.mxu0 0
  %221 = vmatprep.subr.bf16.mxu0 0
  %222 = vmatpush1.bf16.msra.mxu0 0
  %223 = vmatprep.subr.bf16.mxu0 0
  %224 = vmatpush1.bf16.msra.mxu0 0
  %225 = vmatprep.subr.bf16.mxu0 0
  %226 = vmatpush1.bf16.msra.mxu0 0
  %227 = vmatprep.subr.bf16.mxu0 0
  %228 = vmatpush1.bf16.msra.mxu0 0
  %229 = vmatprep.subr.bf16.mxu0 0
  %230 = vmatpush1.bf16.msra.mxu0 0
  %231 = vmatprep.subr.bf16.mxu0 0
  %232 = vmatpush1.bf16.msra.mxu0 0
  %233 = vmatprep.subr.bf16.mxu0 0
  %234 = vmatpush1.bf16.msra.mxu0 0
  %235 = vmatprep.subr.bf16.mxu0 0
  %236 = vmatpush1.bf16.msra.mxu0 0
  %237 = vmatprep.subr.bf16.mxu0 0
  %238 = vmatpush1.bf16.msra.mxu0 0
  %239 = vmatprep.subr.bf16.mxu0 0
  %240 = vmatpush1.bf16.msra.mxu0 0
  %241 = vmatprep.mubr.bf16.mxu0 0
  %242 = vmatmul.mubr.bf16.gmra.mrb[0].mxu0 %v182
  %v243 = vpop.f32.mrb[0].mxu0
  %v244 = vadd.f32 %v63, %v243
  %v245 = vpop.f32.mrb[0].mxu0
  %v246 = vpop.f32.mrb[0].mxu0
  %v247 = vadd.f32 %v68, %v246
  %v248 = vpop.f32.mrb[0].mxu0
  %249 = vmatprep.mubr.bf16.mxu0 0
  %250 = vmatmul.mubr.bf16.gmra.mrb[0].mxu0 %v185
  %v251 = vpop.f32.mrb[0].mxu0
  %v252 = vadd.f32 %v73, %v251
  %v253 = vpop.f32.mrb[0].mxu0
  %v254 = vpop.f32.mrb[0].mxu0
  %v255 = vadd.f32 %v78, %v254
  %v256 = vpop.f32.mrb[0].mxu0
  %257 = vmatprep.mubr.bf16.mxu0 0
  %258 = vmatmul.mubr.bf16.gmra.mrb[0].mxu0 %v188
  %v259 = vpop.f32.mrb[0].mxu0
  %v260 = vadd.f32 %v83, %v259
  %v261 = vpop.f32.mrb[0].mxu0
  %v262 = vpop.f32.mrb[0].mxu0
  %v263 = vadd.f32 %v88, %v262
  %v264 = vpop.f32.mrb[0].mxu0
  %265 = vmatprep.mubr.bf16.mxu0 0
  %266 = vmatmul.mubr.bf16.gmra.mrb[0].mxu0 %v191
  %v267 = vpop.f32.mrb[0].mxu0
  %v268 = vadd.f32 %v93, %v267
  %v269 = vpop.f32.mrb[0].mxu0
  %v270 = vpop.f32.mrb[0].mxu0
  %v271 = vadd.f32 %v98, %v270
  %v272 = vpop.f32.mrb[0].mxu0
  %273 = vmatprep.mubr.bf16.mxu0 0
  %274 = vmatmul.mubr.bf16.gmra.mrb[0].mxu0 %v194
  %v275 = vpop.f32.mrb[0].mxu0
  %v276 = vadd.f32 %v103, %v275
  %v277 = vpop.f32.mrb[0].mxu0
  %v278 = vpop.f32.mrb[0].mxu0
  %v279 = vadd.f32 %v108, %v278
  %v280 = vpop.f32.mrb[0].mxu0
  %281 = vmatprep.mubr.bf16.mxu0 0
  %282 = vmatmul.mubr.bf16.gmra.mrb[0].mxu0 %v197
  %v283 = vpop.f32.mrb[0].mxu0
  %v284 = vadd.f32 %v113, %v283
  %v285 = vpop.f32.mrb[0].mxu0
  %v286 = vpop.f32.mrb[0].mxu0
  %v287 = vadd.f32 %v118, %v286
  %v288 = vpop.f32.mrb[0].mxu0
  %289 = vmatprep.mubr.bf16.mxu0 0
  %290 = vmatmul.mubr.bf16.gmra.mrb[0].mxu0 %v200
  %v291 = vpop.f32.mrb[0].mxu0
  %v292 = vadd.f32 %v123, %v291
  %v293 = vpop.f32.mrb[0].mxu0
  %v294 = vpop.f32.mrb[0].mxu0
  %v295 = vadd.f32 %v128, %v294
  %v296 = vpop.f32.mrb[0].mxu0
  %297 = vmatprep.mubr.bf16.mxu0 0
  %298 = vmatmul.mubr.bf16.gmra.mrb[0].mxu0 %v203
  %v299 = vpop.f32.mrb[0].mxu0
  %v300 = vadd.f32 %v133, %v299
  %v301 = vpop.f32.mrb[0].mxu0
  %v302 = vpop.f32.mrb[0].mxu0
  %v303 = vadd.f32 %v138, %v302
  %v304 = vpop.f32.mrb[0].mxu0
  %305 = vdwg.mxu0
  %v306 = vmax.f32 %v244, 0.0
  %v307 = vmax.f32 %v247, 0.0
  %v308 = vmax.f32 %v252, 0.0
  %v309 = vmax.f32 %v255, 0.0
  %v310 = vmax.f32 %v260, 0.0
  %v311 = vmax.f32 %v263, 0.0
  %v312 = vmax.f32 %v268, 0.0
  %v313 = vmax.f32 %v271, 0.0
  %v314 = vmax.f32 %v276, 0.0
  %v315 = vmax.f32 %v279, 0.0
  %v316 = vmax.f32 %v284, 0.0
  %v317 = vmax.f32 %v287, 0.0
  %v318 = vmax.f32 %v292, 0.0
  %v319 = vmax.f32 %v295, 0.0
  %v320 = vmax.f32 %v300, 0.0
  %v321 = vmax.f32 %v303, 0.0
  %v322 = vld [vmem:[%s3] sm:$0xf]
  %v323 = vld [vmem:[%s3 + $0x4] sm:$0xf]
  %v324 = vld [vmem:[%s3 + $0x8] sm:$0xf]
  %v325 = vld [vmem:[%s3 + $0xc] sm:$0xf]
  %v326 = vld [vmem:[%s3 + $0x10] sm:$0xf]
  %v327 = vld [vmem:[%s3 + $0x14] sm:$0xf]
  %v328 = vld [vmem:[%s3 + $0x18] sm:$0xf]
  %v329 = vld [vmem:[%s3 + $0x1c] sm:$0xf]
  %v330 = vpack.c.bf16 %v307, %v306
  %v331 = vpack.c.bf16 %v309, %v308
  %v332 = vpack.c.bf16 %v311, %v310
  %v333 = vpack.c.bf16 %v313, %v312
  %v334 = vpack.c.bf16 %v315, %v314
  %v335 = vpack.c.bf16 %v317, %v316
  %v336 = vpack.c.bf16 %v319, %v318
  %v337 = vpack.c.bf16 %v321, %v320
  %v338 = vld [vmem:[%s4] sm:$0xff]
  %v339 = vld [vmem:[%s4 + $0x8] sm:$0xff]
  %v340 = vld [vmem:[%s4 + $0x10] sm:$0xff]
  %v341 = vld [vmem:[%s4 + $0x18] sm:$0xff]
  %v342 = vld [vmem:[%s4 + $0x20] sm:$0xff]
  %v343 = vld [vmem:[%s4 + $0x28] sm:$0xff]
  %v344 = vld [vmem:[%s4 + $0x30] sm:$0xff]
  %v345 = vld [vmem:[%s4 + $0x38] sm:$0xff]
  %347 = vset.pattern.permute.xlu0 0
  %348 = vperm.xlu0 %347, %v338
  %v349 = vpop.permute.xlu0 %348
  %352 = vset.pattern.permute.xlu0 0
  %353 = vperm.xlu0 %352, %v339
  %v354 = vpop.permute.xlu0 %353
  %357 = vset.pattern.permute.xlu0 0
  %358 = vperm.xlu0 %357, %v340
  %v359 = vpop.permute.xlu0 %358
  %362 = vset.pattern.permute.xlu0 0
  %363 = vperm.xlu0 %362, %v341
  %v364 = vpop.permute.xlu0 %363
  %367 = vset.pattern.permute.xlu0 0
  %368 = vperm.xlu0 %367, %v342
  %v369 = vpop.permute.xlu0 %368
  %372 = vset.pattern.permute.xlu0 0
  %373 = vperm.xlu0 %372, %v343
  %v374 = vpop.permute.xlu0 %373
  %377 = vset.pattern.permute.xlu0 0
  %378 = vperm.xlu0 %377, %v344
  %v379 = vpop.permute.xlu0 %378
  %382 = vset.pattern.permute.xlu0 0
  %383 = vperm.xlu0 %382, %v345
  %v384 = vpop.permute.xlu0 %383
  %v394 = vunpack.c.l.b16 %v322
  %v395 = vunpack.c.l.b16 %v323
  %v396 = vunpack.c.l.b16 %v324
  %v397 = vunpack.c.l.b16 %v325
  %v398 = vunpack.c.l.b16 %v326
  %v399 = vunpack.c.l.b16 %v327
  %v400 = vunpack.c.l.b16 %v328
  %v401 = vunpack.c.l.b16 %v329
  %v402 = vpack.c.b16 %v395, %v394
  %v403 = vpack.c.b16 %v397, %v396
  %v404 = vpack.c.b16 %v399, %v398
  %v405 = vpack.c.b16 %v401, %v400
  %410 = vmatprep.subr.bf16.mxu0 0
  %411 = vmatpush1.bf16.msra.mxu0 %v330
  %412 = vmatprep.subr.bf16.mxu0 0
  %413 = vmatpush1.bf16.msra.mxu0 %v331
  %414 = vmatprep.subr.bf16.mxu0 0
  %415 = vmatpush1.bf16.msra.mxu0 %v332
  %416 = vmatprep.subr.bf16.mxu0 0
  %417 = vmatpush1.bf16.msra.mxu0 %v333
  %418 = vmatprep.subr.bf16.mxu0 0
  %419 = vmatpush1.bf16.msra.mxu0 %v334
  %420 = vmatprep.subr.bf16.mxu0 0
  %421 = vmatpush1.bf16.msra.mxu0 %v335
  %422 = vmatprep.subr.bf16.mxu0 0
  %423 = vmatpush1.bf16.msra.mxu0 %v336
  %424 = vmatprep.subr.bf16.mxu0 0
  %425 = vmatpush1.bf16.msra.mxu0 %v337
  %426 = vmatprep.subr.bf16.mxu0 0
  %427 = vmatpush1.bf16.msra.mxu0 0
  %428 = vmatprep.subr.bf16.mxu0 0
  %429 = vmatpush1.bf16.msra.mxu0 0
  %430 = vmatprep.subr.bf16.mxu0 0
  %431 = vmatpush1.bf16.msra.mxu0 0
  %432 = vmatprep.subr.bf16.mxu0 0
  %433 = vmatpush1.bf16.msra.mxu0 0
  %434 = vmatprep.subr.bf16.mxu0 0
  %435 = vmatpush1.bf16.msra.mxu0 0
  %436 = vmatprep.subr.bf16.mxu0 0
  %437 = vmatpush1.bf16.msra.mxu0 0
  %438 = vmatprep.subr.bf16.mxu0 0
  %439 = vmatpush1.bf16.msra.mxu0 0
  %440 = vmatprep.subr.bf16.mxu0 0
  %441 = vmatpush1.bf16.msra.mxu0 0
  %442 = vmatprep.mubr.bf16.mxu0 0
  %443 = vmatmul.mubr.bf16.gmra.mrb[0].mxu0 %v402
  %v444 = vpop.f32.mrb[0].mxu0
  %v445 = vadd.f32 %v349, %v444
  %v446 = vpop.f32.mrb[0].mxu0
  %v447 = vpop.f32.mrb[0].mxu0
  %v448 = vadd.f32 %v354, %v447
  %v449 = vpop.f32.mrb[0].mxu0
  %450 = vmatprep.mubr.bf16.mxu0 0
  %451 = vmatmul.mubr.bf16.gmra.mrb[0].mxu0 %v403
  %v452 = vpop.f32.mrb[0].mxu0
  %v453 = vadd.f32 %v359, %v452
  %v454 = vpop.f32.mrb[0].mxu0
  %v455 = vpop.f32.mrb[0].mxu0
  %v456 = vadd.f32 %v364, %v455
  %v457 = vpop.f32.mrb[0].mxu0
  %458 = vmatprep.mubr.bf16.mxu0 0
  %459 = vmatmul.mubr.bf16.gmra.mrb[0].mxu0 %v404
  %v460 = vpop.f32.mrb[0].mxu0
  %v461 = vadd.f32 %v369, %v460
  %v462 = vpop.f32.mrb[0].mxu0
  %v463 = vpop.f32.mrb[0].mxu0
  %v464 = vadd.f32 %v374, %v463
  %v465 = vpop.f32.mrb[0].mxu0
  %466 = vmatprep.mubr.bf16.mxu0 0
  %467 = vmatmul.mubr.bf16.gmra.mrb[0].mxu0 %v405
  %v468 = vpop.f32.mrb[0].mxu0
  %v469 = vadd.f32 %v379, %v468
  %v470 = vpop.f32.mrb[0].mxu0
  %v471 = vpop.f32.mrb[0].mxu0
  %v472 = vadd.f32 %v384, %v471
  %v473 = vpop.f32.mrb[0].mxu0
  %474 = vdwg.mxu0
  %v475 = vmax.f32 %v445, 0.0
  %v476 = vmax.f32 %v448, 0.0
  %v477 = vmax.f32 %v453, 0.0
  %v478 = vmax.f32 %v456, 0.0
  %v479 = vmax.f32 %v461, 0.0
  %v480 = vmax.f32 %v464, 0.0
  %v481 = vmax.f32 %v469, 0.0
  %v482 = vmax.f32 %v472, 0.0
  %v483 = vld [vmem:[%s5] sm:$0x1]
  %v484 = vpack.c.bf16 %v476, %v475
  %v485 = vpack.c.bf16 %v478, %v477
  %v486 = vpack.c.bf16 %v480, %v479
  %v487 = vpack.c.bf16 %v482, %v481
  %v488 = vld [vmem:[%s6] sm:$0x3]
  %490 = vset.pattern.permute.xlu0 0
  %491 = vperm.xlu0 %490, %v488
  %v492 = vpop.permute.xlu0 %491
  %vm494 = vcmask 523264
  %v496 = vsel %vm494, %v483, 0
  %498 = vmatprep.subr.bf16.mxu0 0
  %499 = vmatpush1.bf16.msra.mxu0 %v484
  %500 = vmatprep.subr.bf16.mxu0 0
  %501 = vmatpush1.bf16.msra.mxu0 %v485
  %502 = vmatprep.subr.bf16.mxu0 0
  %503 = vmatpush1.bf16.msra.mxu0 %v486
  %504 = vmatprep.subr.bf16.mxu0 0
  %505 = vmatpush1.bf16.msra.mxu0 %v487
  %506 = vmatprep.subr.bf16.mxu0 0
  %507 = vmatpush1.bf16.msra.mxu0 0
  %508 = vmatprep.subr.bf16.mxu0 0
  %509 = vmatpush1.bf16.msra.mxu0 0
  %510 = vmatprep.subr.bf16.mxu0 0
  %511 = vmatpush1.bf16.msra.mxu0 0
  %512 = vmatprep.subr.bf16.mxu0 0
  %513 = vmatpush1.bf16.msra.mxu0 0
  %514 = vmatprep.subr.bf16.mxu0 0
  %515 = vmatpush1.bf16.msra.mxu0 0
  %516 = vmatprep.subr.bf16.mxu0 0
  %517 = vmatpush1.bf16.msra.mxu0 0
  %518 = vmatprep.subr.bf16.mxu0 0
  %519 = vmatpush1.bf16.msra.mxu0 0
  %520 = vmatprep.subr.bf16.mxu0 0
  %521 = vmatpush1.bf16.msra.mxu0 0
  %522 = vmatprep.subr.bf16.mxu0 0
  %523 = vmatpush1.bf16.msra.mxu0 0
  %524 = vmatprep.subr.bf16.mxu0 0
  %525 = vmatpush1.bf16.msra.mxu0 0
  %526 = vmatprep.subr.bf16.mxu0 0
  %527 = vmatpush1.bf16.msra.mxu0 0
  %528 = vmatprep.subr.bf16.mxu0 0
  %529 = vmatpush1.bf16.msra.mxu0 0
  %530 = vmatprep.mubr.bf16.mxu0 0
  %531 = vmatmul.mubr.bf16.gmra.mrb[0].mxu0 %v496
  %v532 = vpop.f32.mrb[0].mxu0
  %v533 = vadd.f32 %v492, %v532
  %v534 = vpop.f32.mrb[0].mxu0
  %v535 = vpop.f32.mrb[0].mxu0
  %v536 = vpop.f32.mrb[0].mxu0
  %537 = vdwg.mxu0
  %v538 = vtanh.pop %v533
  %539 = vst [vmem:[%s7] sm:$0x3] %v538
  // Predicated region
  $region30: #{munet_ann_forward.1} parent=0 // pred_check
    _
  $region31: #{munet_ann_forward.1} parent=0 // pred_check_branch
    %541 = sbr.rel (0) target = $region33
  $region32: #{munet_ann_forward.1} parent=0 // pred_region
    _
  $region33: #{munet_ann_forward.1} parent=0 // pred_fallthru
    _
  // Predicated region
  $region34: #{munet_ann_forward.1} parent=0 // pred_check
    _
  $region35: #{munet_ann_forward.1} parent=0 // pred_check_branch
    %543 = sbr.rel (0) target = $region37
  $region36: #{munet_ann_forward.1} parent=0 // pred_region
    _
  $region37: #{munet_ann_forward.1} parent=0 // pred_fallthru
    _

</llo_original>
